<compile_context>
chip_gen: v7x
topology: tpu7x:2x2x1
jax: 0.10.0
libtpu: 0.0.40
codegen_flags: <defaults>
</compile_context>

<pallas_src>
import jax
import jax.numpy as jnp
from jax.experimental import pallas as pl
from jax.experimental.pallas import tpu as pltpu

_LANE = 128


def _cdiv(a: int, b: int) -> int:
    return (a + b - 1) // b


def _round_up(n: int, m: int) -> int:
    return _cdiv(n, m) * m


def _mlp_kernel(x_ref,
                w1_ref, b1_ref,
                w2_ref, b2_ref,
                w3_ref, b3_ref,
                w4_ref, b4_ref,
                o_ref):
    """Fused 4-layer MLP in transposed layout (one batch tile).

    x_ref:  (d_in,  TB)  batch on the lane axis (lane-dense loads)
    wN_ref: (out,   in)  PyTorch-native weight orientation
    bN_ref: (out,   1)   broadcast across the batch lanes
    o_ref:  (d_out, TB)  unmasked full-width stores (TB % 128 == 0)
    """
    h = x_ref[...]

    h = jnp.dot(w1_ref[...], h, preferred_element_type=jnp.float32)
    h = jnp.maximum(h + b1_ref[...], 0.0)

    h = jnp.dot(w2_ref[...], h, preferred_element_type=jnp.float32)
    h = jnp.maximum(h + b2_ref[...], 0.0)

    h = jnp.dot(w3_ref[...], h, preferred_element_type=jnp.float32)
    h = jnp.maximum(h + b3_ref[...], 0.0)

    h = jnp.dot(w4_ref[...], h, preferred_element_type=jnp.float32)
    o_ref[...] = (h + b4_ref[...]).astype(o_ref.dtype)


def nn_forward(x, params, *, tile_b: int = 8192, min_pallas_batch: int = 256,
               force_pallas: bool = False, stream_bf16: bool = False):
    """Forward pass of the policy MLP.

    Args:
      x: (batch, input_dims) or (input_dims,) array; cast to float32
         (mirrors `torch.tensor(input).float()`).
      params: dict with wN shaped (out, in) and bN shaped (out, 1).
      tile_b: max batch columns per grid step (rounded to a lane multiple).
      min_pallas_batch: below this batch size use a plain-jnp fast path
         (kernel-launch/DMA overhead dominates tiny per-step RL calls).
      force_pallas: always use the Pallas kernel (for testing).
      stream_bf16: cast x and weights to bf16 for the MXU (v6e/v7x win);
         accumulation, bias and ReLU stay float32.
    Returns:
      float32 logits, shape (batch, output_dims) (or (output_dims,) for 1-D x).
    """
    x = jnp.asarray(x, jnp.float32)
    squeeze = (x.ndim == 1)
    if squeeze:
        x = x[None, :]
    batch, d_in = x.shape
    hidden = params["w1"].shape[0]
    d_out = params["w4"].shape[0]

    # --- tiny-batch fast path: let XLA fuse it, skip the custom call -------
    if batch < min_pallas_batch and not force_pallas:
        out = reference_forward(x, params)
        return out[0] if squeeze else out

    # --- batch tiling: batch on the lane axis, pad only to lane multiple ---
    padded0 = _round_up(max(batch, 1), _LANE)
    num_chunks = padded0 // _LANE
    tile = max(_round_up(tile_b, _LANE), _LANE)
    steps = _cdiv(padded0, tile)
    if num_chunks >= 2:
        steps = max(steps, 2)          # >=2 grid steps -> v7x megacore shards
    steps = min(steps, num_chunks)
    tb = _round_up(_cdiv(padded0, steps), _LANE)
    steps = _cdiv(padded0, tb)
    padded = steps * tb

    # Transposed, lane-dense streaming layout: (d_in, padded_batch).
    xt = jnp.pad(x.T, ((0, 0), (0, padded - batch)))

    w1, b1 = params["w1"], params["b1"]
    w2, b2 = params["w2"], params["b2"]
    w3, b3 = params["w3"], params["b3"]
    w4, b4 = params["w4"], params["b4"]

    if stream_bf16:
        xt = xt.astype(jnp.bfloat16)
        w1, w2, w3, w4 = (w.astype(jnp.bfloat16) for w in (w1, w2, w3, w4))

    vmem = pltpu.MemorySpace.VMEM

    def x_map(i):
        return (0, i)

    def const_map(i):
        return (0, 0)

    in_specs = [
        pl.BlockSpec((d_in, tb), x_map, memory_space=vmem),
        pl.BlockSpec(w1.shape, const_map, memory_space=vmem),
        pl.BlockSpec(b1.shape, const_map, memory_space=vmem),
        pl.BlockSpec(w2.shape, const_map, memory_space=vmem),
        pl.BlockSpec(b2.shape, const_map, memory_space=vmem),
        pl.BlockSpec(w3.shape, const_map, memory_space=vmem),
        pl.BlockSpec(b3.shape, const_map, memory_space=vmem),
        pl.BlockSpec(w4.shape, const_map, memory_space=vmem),
        pl.BlockSpec(b4.shape, const_map, memory_space=vmem),
    ]
    out_specs = pl.BlockSpec((d_out, tb), x_map, memory_space=vmem)

    stream_itemsize = 2 if stream_bf16 else 4
    param_bytes = sum(int(p.size) * p.dtype.itemsize
                      for p in (w1, b1, w2, b2, w3, b3, w4, b4))

    # Advisory cost estimate for XLA's scheduler.
    flops = 2 * padded * (d_in * hidden + 2 * hidden * hidden + hidden * d_out)
    bytes_accessed = (padded * d_in * stream_itemsize
                      + padded * d_out * 4 + param_bytes)
    cost = pl.CostEstimate(flops=flops, transcendentals=0,
                           bytes_accessed=bytes_accessed)

    # Scoped VMEM: computed from actual block sizes, clamped well under the
    # 64 MiB physical VMEM of a v7x TensorCore.
    stream_bytes = 2 * tb * (d_in * stream_itemsize + d_out * 4)   # 2x buffers
    inter_bytes = 4 * tb * hidden * 4                              # live f32 h
    vmem_limit = min(32 * 1024 * 1024,
                     max(4 * 1024 * 1024,
                         2 * (stream_bytes + inter_bytes + param_bytes)))

    out_t = pl.pallas_call(
        _mlp_kernel,
        out_shape=jax.ShapeDtypeStruct((d_out, padded), jnp.float32),
        grid=(steps,),
        in_specs=in_specs,
        out_specs=out_specs,
        compiler_params=pltpu.CompilerParams(
            dimension_semantics=("parallel",),
            vmem_limit_bytes=vmem_limit,
        ),
        cost_estimate=cost,
    )(xt, w1, b1, w2, b2, w3, b3, w4, b4)

    out = out_t[:, :batch].T
    return out[0] if squeeze else out


def init_params(key, input_dims, output_dims, hidden=32):
    """Deterministic init matching the PyTorch module's layer shapes.

    Weights are kept in PyTorch-native (out, in) orientation; biases are
    stored as (out, 1) so the kernel can broadcast them across batch lanes.
    """
    dims = [(hidden, input_dims), (hidden, hidden),
            (hidden, hidden), (output_dims, hidden)]
    params = {}
    for i, (dout, din) in enumerate(dims, start=1):
        key, kw, kb = jax.random.split(key, 3)
        bound = 1.0 / jnp.sqrt(jnp.float32(din))   # torch default U(-1/sqrt(in), +)
        params[f"w{i}"] = jax.random.uniform(
            kw, (dout, din), jnp.float32, -bound, bound)
        params[f"b{i}"] = jax.random.uniform(
            kb, (dout, 1), jnp.float32, -bound, bound)
    return params


def reference_forward(x, params):
    """Plain-JAX reference (row-major batch layout) for correctness checks."""
    h = jnp.asarray(x, jnp.float32)
    h = jnp.maximum(h @ params["w1"].T + params["b1"][:, 0], 0.0)
    h = jnp.maximum(h @ params["w2"].T + params["b2"][:, 0], 0.0)
    h = jnp.maximum(h @ params["w3"].T + params["b3"][:, 0], 0.0)
    return h @ params["w4"].T + params["b4"][:, 0]


if __name__ == "__main__":
    key = jax.random.PRNGKey(0)
    key, kx1, kx2, kp = jax.random.split(key, 4)

    input_dims = 4     # e.g. CartPole observation dim
    output_dims = 2    # e.g. CartPole action logits
    params = init_params(kp, input_dims, output_dims)

    # 1) Tiny batch through the Pallas kernel (single 128-lane grid step).
    batch = 8
    x_small = jax.random.normal(kx1, (batch, input_dims), jnp.float32)
    out_small = jax.block_until_ready(
        nn_forward(x_small, params, force_pallas=True))
    ref_small = reference_forward(x_small, params)
    assert out_small.shape == (batch, output_dims)
    assert jnp.allclose(out_small, ref_small, atol=1e-4, rtol=1e-4), \
        "mismatch vs reference (small batch)"

    # 2) Multi-tile batch with lane padding — exercises the grid / pipelining
    #    path and the >=2-step megacore split (forced small tile).
    batch2 = 300
    x_big = jax.random.normal(kx2, (batch2, input_dims), jnp.float32)
    out_big = jax.block_until_ready(
        nn_forward(x_big, params, tile_b=128, force_pallas=True))
    ref_big = reference_forward(x_big, params)
    assert out_big.shape == (batch2, output_dims)
    assert jnp.allclose(out_big, ref_big, atol=1e-4, rtol=1e-4), \
        "mismatch vs reference (multi-tile batch)"

    # 3) bf16-streaming variant (v6e/v7x): runs through the same kernel with
    #    half the streamed bytes; f32 accumulate keeps it close to reference.
    out_bf16 = jax.block_until_ready(
        nn_forward(x_big, params, tile_b=128, force_pallas=True,
                   stream_bf16=True))
    assert out_bf16.shape == (batch2, output_dims)
    assert jnp.allclose(out_bf16, ref_big, atol=2e-1, rtol=2e-1), \
        "mismatch vs reference (bf16 streaming)"

    # 4) Tiny per-step RL call takes the plain-jnp fast path (no pallas_call).
    x_tiny = x_small[:2]
    out_tiny = jax.block_until_ready(nn_forward(x_tiny, params))
    assert out_tiny.shape == (2, output_dims)
    assert jnp.allclose(out_tiny, reference_forward(x_tiny, params),
                        atol=1e-5, rtol=1e-5)

    print("KERNEL_OK")
</pallas_src>

<mosaic_0001>
module attributes {stable_mosaic.version = 11 : i64} {
  func.func @_mlp_kernel(%arg0: i32, %arg1: memref<4x128xf32, #tpu.memory_space<vmem>>, %arg2: memref<32x4xf32, #tpu.memory_space<vmem>>, %arg3: memref<32x1xf32, #tpu.memory_space<vmem>>, %arg4: memref<32x32xf32, #tpu.memory_space<vmem>>, %arg5: memref<32x1xf32, #tpu.memory_space<vmem>>, %arg6: memref<32x32xf32, #tpu.memory_space<vmem>>, %arg7: memref<32x1xf32, #tpu.memory_space<vmem>>, %arg8: memref<2x32xf32, #tpu.memory_space<vmem>>, %arg9: memref<2x1xf32, #tpu.memory_space<vmem>>, %arg10: memref<2x128xf32, #tpu.memory_space<vmem>>) attributes {dimension_semantics = [#tpu.dimension_semantics<parallel>], iteration_bounds = array<i64: 1>, scalar_prefetch = 0 : i64, scratch_operands = 0 : i64, tpu.core_type = #tpu.core_type<tc>, window_params = [{transform_indices = @transform_0, window_bounds = array<i64: 4, 128>}, {pipeline_mode = #tpu.pipeline_mode<synchronous>, transform_indices = @transform_1, window_bounds = array<i64: 32, 4>}, {pipeline_mode = #tpu.pipeline_mode<synchronous>, transform_indices = @transform_2, window_bounds = array<i64: 32, 1>}, {pipeline_mode = #tpu.pipeline_mode<synchronous>, transform_indices = @transform_3, window_bounds = array<i64: 32, 32>}, {pipeline_mode = #tpu.pipeline_mode<synchronous>, transform_indices = @transform_4, window_bounds = array<i64: 32, 1>}, {pipeline_mode = #tpu.pipeline_mode<synchronous>, transform_indices = @transform_5, window_bounds = array<i64: 32, 32>}, {pipeline_mode = #tpu.pipeline_mode<synchronous>, transform_indices = @transform_6, window_bounds = array<i64: 32, 1>}, {pipeline_mode = #tpu.pipeline_mode<synchronous>, transform_indices = @transform_7, window_bounds = array<i64: 2, 32>}, {pipeline_mode = #tpu.pipeline_mode<synchronous>, transform_indices = @transform_8, window_bounds = array<i64: 2, 1>}, {transform_indices = @transform_9, window_bounds = array<i64: 2, 128>}]} {
    %c0 = arith.constant 0 : index
    %c0_0 = arith.constant 0 : index
    %0 = vector.load %arg1[%c0, %c0_0] : memref<4x128xf32, #tpu.memory_space<vmem>>, vector<4x128xf32>
    %c0_1 = arith.constant 0 : index
    %c0_2 = arith.constant 0 : index
    %1 = vector.load %arg2[%c0_1, %c0_2] : memref<32x4xf32, #tpu.memory_space<vmem>>, vector<32x4xf32>
    %cst = arith.constant dense<0.000000e+00> : vector<32x128xf32>
    %2 = tpu.matmul %1, %0, %cst {dimension_numbers = #tpu.dot_dimension_numbers<[1], [0], [0], [1], [0, 0, 1, 1], [], []>} : vector<32x4xf32>, vector<4x128xf32>, vector<32x128xf32> -> vector<32x128xf32>
    %c0_3 = arith.constant 0 : index
    %c0_4 = arith.constant 0 : index
    %3 = vector.load %arg3[%c0_3, %c0_4] : memref<32x1xf32, #tpu.memory_space<vmem>>, vector<32x1xf32>
    %4 = vector.broadcast %3 : vector<32x1xf32> to vector<32x128xf32>
    %5 = arith.addf %2, %4 : vector<32x128xf32>
    %cst_5 = arith.constant 0.000000e+00 : f32
    %6 = vector.broadcast %cst_5 : f32 to vector<32x128xf32>
    %7 = arith.maximumf %5, %6 : vector<32x128xf32>
    %c0_6 = arith.constant 0 : index
    %c0_7 = arith.constant 0 : index
    %8 = vector.load %arg4[%c0_6, %c0_7] : memref<32x32xf32, #tpu.memory_space<vmem>>, vector<32x32xf32>
    %cst_8 = arith.constant dense<0.000000e+00> : vector<32x128xf32>
    %9 = tpu.matmul %8, %7, %cst_8 {dimension_numbers = #tpu.dot_dimension_numbers<[1], [0], [0], [1], [0, 0, 1, 1], [], []>} : vector<32x32xf32>, vector<32x128xf32>, vector<32x128xf32> -> vector<32x128xf32>
    %c0_9 = arith.constant 0 : index
    %c0_10 = arith.constant 0 : index
    %10 = vector.load %arg5[%c0_9, %c0_10] : memref<32x1xf32, #tpu.memory_space<vmem>>, vector<32x1xf32>
    %11 = vector.broadcast %10 : vector<32x1xf32> to vector<32x128xf32>
    %12 = arith.addf %9, %11 : vector<32x128xf32>
    %cst_11 = arith.constant 0.000000e+00 : f32
    %13 = vector.broadcast %cst_11 : f32 to vector<32x128xf32>
    %14 = arith.maximumf %12, %13 : vector<32x128xf32>
    %c0_12 = arith.constant 0 : index
    %c0_13 = arith.constant 0 : index
    %15 = vector.load %arg6[%c0_12, %c0_13] : memref<32x32xf32, #tpu.memory_space<vmem>>, vector<32x32xf32>
    %cst_14 = arith.constant dense<0.000000e+00> : vector<32x128xf32>
    %16 = tpu.matmul %15, %14, %cst_14 {dimension_numbers = #tpu.dot_dimension_numbers<[1], [0], [0], [1], [0, 0, 1, 1], [], []>} : vector<32x32xf32>, vector<32x128xf32>, vector<32x128xf32> -> vector<32x128xf32>
    %c0_15 = arith.constant 0 : index
    %c0_16 = arith.constant 0 : index
    %17 = vector.load %arg7[%c0_15, %c0_16] : memref<32x1xf32, #tpu.memory_space<vmem>>, vector<32x1xf32>
    %18 = vector.broadcast %17 : vector<32x1xf32> to vector<32x128xf32>
    %19 = arith.addf %16, %18 : vector<32x128xf32>
    %cst_17 = arith.constant 0.000000e+00 : f32
    %20 = vector.broadcast %cst_17 : f32 to vector<32x128xf32>
    %21 = arith.maximumf %19, %20 : vector<32x128xf32>
    %c0_18 = arith.constant 0 : index
    %c0_19 = arith.constant 0 : index
    %22 = vector.load %arg8[%c0_18, %c0_19] : memref<2x32xf32, #tpu.memory_space<vmem>>, vector<2x32xf32>
    %cst_20 = arith.constant dense<0.000000e+00> : vector<2x128xf32>
    %23 = tpu.matmul %22, %21, %cst_20 {dimension_numbers = #tpu.dot_dimension_numbers<[1], [0], [0], [1], [0, 0, 1, 1], [], []>} : vector<2x32xf32>, vector<32x128xf32>, vector<2x128xf32> -> vector<2x128xf32>
    %c0_21 = arith.constant 0 : index
    %c0_22 = arith.constant 0 : index
    %24 = vector.load %arg9[%c0_21, %c0_22] : memref<2x1xf32, #tpu.memory_space<vmem>>, vector<2x1xf32>
    %25 = vector.broadcast %24 : vector<2x1xf32> to vector<2x128xf32>
    %26 = arith.addf %23, %25 : vector<2x128xf32>
    %c0_23 = arith.constant 0 : index
    %c0_24 = arith.constant 0 : index
    %27 = vector.load %arg10[%c0_23, %c0_24] : memref<2x128xf32, #tpu.memory_space<vmem>>, vector<2x128xf32>
    tpu.vector_store %arg10[%c0_23, %c0_24], %26 {strides = array<i32>} : memref<2x128xf32, #tpu.memory_space<vmem>>, vector<2x128xf32>,
    return
  }
  func.func @transform_0(%arg0: i32) -> (i32, i32) {
    %c0_i32 = arith.constant 0 : i32
    %c0_i32_0 = arith.constant 0 : i32
    return %c0_i32, %arg0 : i32, i32
  }
  func.func @transform_1(%arg0: i32) -> (i32, i32) {
    %c0_i32 = arith.constant 0 : i32
    %c0_i32_0 = arith.constant 0 : i32
    %c0_i32_1 = arith.constant 0 : i32
    return %c0_i32, %c0_i32_0 : i32, i32
  }
  func.func @transform_2(%arg0: i32) -> (i32, i32) {
    %c0_i32 = arith.constant 0 : i32
    %c0_i32_0 = arith.constant 0 : i32
    %c0_i32_1 = arith.constant 0 : i32
    return %c0_i32, %c0_i32_0 : i32, i32
  }
  func.func @transform_3(%arg0: i32) -> (i32, i32) {
    %c0_i32 = arith.constant 0 : i32
    %c0_i32_0 = arith.constant 0 : i32
    %c0_i32_1 = arith.constant 0 : i32
    return %c0_i32, %c0_i32_0 : i32, i32
  }
  func.func @transform_4(%arg0: i32) -> (i32, i32) {
    %c0_i32 = arith.constant 0 : i32
    %c0_i32_0 = arith.constant 0 : i32
    %c0_i32_1 = arith.constant 0 : i32
    return %c0_i32, %c0_i32_0 : i32, i32
  }
  func.func @transform_5(%arg0: i32) -> (i32, i32) {
    %c0_i32 = arith.constant 0 : i32
    %c0_i32_0 = arith.constant 0 : i32
    %c0_i32_1 = arith.constant 0 : i32
    return %c0_i32, %c0_i32_0 : i32, i32
  }
  func.func @transform_6(%arg0: i32) -> (i32, i32) {
    %c0_i32 = arith.constant 0 : i32
    %c0_i32_0 = arith.constant 0 : i32
    %c0_i32_1 = arith.constant 0 : i32
    return %c0_i32, %c0_i32_0 : i32, i32
  }
  func.func @transform_7(%arg0: i32) -> (i32, i32) {
    %c0_i32 = arith.constant 0 : i32
    %c0_i32_0 = arith.constant 0 : i32
    %c0_i32_1 = arith.constant 0 : i32
    return %c0_i32, %c0_i32_0 : i32, i32
  }
  func.func @transform_8(%arg0: i32) -> (i32, i32) {
    %c0_i32 = arith.constant 0 : i32
    %c0_i32_0 = arith.constant 0 : i32
    %c0_i32_1 = arith.constant 0 : i32
    return %c0_i32, %c0_i32_0 : i32, i32
  }
  func.func @transform_9(%arg0: i32) -> (i32, i32) {
    %c0_i32 = arith.constant 0 : i32
    %c0_i32_0 = arith.constant 0 : i32
    return %c0_i32, %arg0 : i32, i32
  }
}

</mosaic_0001>

<llo_original>
// kernel: tpu_custom_call.1
$region0: #{tpu_custom_call.1}
  #allocation0 [shape = 'u32[]', space=smem, size = 0x4, offset = 0x4, fixed_abs, tag = 'smem constant byte address 0x4 - core index']
  #allocation1 [shape = 'u32[144,128]{1,0:T(1,128)}', space=vmem, size = 0x12000, scoped, tag = 'internal scratch']
  %s0 = inlined_call_operand.vmem [shape: f32[4,128], index: 0, kind: input, shape index: {}]
  %s1 = inlined_call_operand.vmem [shape: f32[32,4], index: 1, kind: input, shape index: {}]
  %s2 = inlined_call_operand.vmem [shape: f32[32,1], index: 2, kind: input, shape index: {}]
  %s3 = inlined_call_operand.vmem [shape: f32[32,32], index: 3, kind: input, shape index: {}]
  %s4 = inlined_call_operand.vmem [shape: f32[32,1], index: 4, kind: input, shape index: {}]
  %s5 = inlined_call_operand.vmem [shape: f32[32,32], index: 5, kind: input, shape index: {}]
  %s6 = inlined_call_operand.vmem [shape: f32[32,1], index: 6, kind: input, shape index: {}]
  %s7 = inlined_call_operand.vmem [shape: f32[2,32], index: 7, kind: input, shape index: {}]
  %s8 = inlined_call_operand.vmem [shape: f32[2,1], index: 8, kind: input, shape index: {}]
  %s9 = inlined_call_operand.hbm [shape: f32[2,128], index: 9, kind: output, shape index: {}]
  %s10 = sld [smem:[#allocation0]]
  $region46: #{tpu_custom_call.1} parent=0
    _
  %s12 = ssub.s32 1, %s10
  %s13 = scalar_select 0, %s12, %s10
  $region1: #{tpu_custom_call.1} parent=0
    #allocation2 [shape = 'u8[1024]{0}', space=vmem, size = 0x400, scoped, tag = 'output window, operand 0, single buffered']
    #allocation3 [shape = 's32[1]{0}', space=sflag, size = 0x4, scoped, tag = 'scoped memory for tpu_custom_call.1']
    %14 = vsyncpa [#allocation3], 0
    // Predicated region
    $region2: #{tpu_custom_call.1} parent=1 // pred_check
      _
    $region3: #{tpu_custom_call.1} parent=1 // pred_check_branch
      %16 = sbr.rel (0) target = $region5
    $region4: #{tpu_custom_call.1} parent=1 // pred_region
      _
    $region5: #{tpu_custom_call.1} parent=1 // pred_fallthru
      _
    // Predicated region
    $region6: #{tpu_custom_call.1} parent=1 // pred_check
      _
    $region7: #{tpu_custom_call.1} parent=1 // pred_check_branch
      %18 = sbr.rel (0) target = $region9
    $region8: #{tpu_custom_call.1} parent=1 // pred_region
      _
    $region9: #{tpu_custom_call.1} parent=1 // pred_fallthru
      _
    // Predicated region
    $region10: #{tpu_custom_call.1} parent=1 // pred_check
      _
    $region11: #{tpu_custom_call.1} parent=1 // pred_check_branch
      %20 = sbr.rel (0) target = $region13
    $region12: #{tpu_custom_call.1} parent=1 // pred_region
      _
    $region13: #{tpu_custom_call.1} parent=1 // pred_fallthru
      _
    // Predicated region
    $region14: #{tpu_custom_call.1} parent=1 // pred_check
      _
    $region15: #{tpu_custom_call.1} parent=1 // pred_check_branch
      %22 = sbr.rel (0) target = $region17
    $region16: #{tpu_custom_call.1} parent=1 // pred_region
      _
    $region17: #{tpu_custom_call.1} parent=1 // pred_fallthru
      _
    // Predicated region
    $region18: #{tpu_custom_call.1} parent=1 // pred_check
      _
    $region19: #{tpu_custom_call.1} parent=1 // pred_check_branch
      %24 = sbr.rel (0) target = $region21
    $region20: #{tpu_custom_call.1} parent=1 // pred_region
      _
    $region21: #{tpu_custom_call.1} parent=1 // pred_fallthru
      _
    // Predicated region
    $region22: #{tpu_custom_call.1} parent=1 // pred_check
      _
    $region23: #{tpu_custom_call.1} parent=1 // pred_check_branch
      %26 = sbr.rel (0) target = $region25
    $region24: #{tpu_custom_call.1} parent=1 // pred_region
      _
    $region25: #{tpu_custom_call.1} parent=1 // pred_fallthru
      _
    // Predicated region
    $region26: #{tpu_custom_call.1} parent=1 // pred_check
      _
    $region27: #{tpu_custom_call.1} parent=1 // pred_check_branch
      %28 = sbr.rel (0) target = $region29
    $region28: #{tpu_custom_call.1} parent=1 // pred_region
      _
    $region29: #{tpu_custom_call.1} parent=1 // pred_fallthru
      _
    // Predicated region
    $region30: #{tpu_custom_call.1} parent=1 // pred_check
      _
    $region31: #{tpu_custom_call.1} parent=1 // pred_check_branch
      %30 = sbr.rel (0) target = $region33
    $region32: #{tpu_custom_call.1} parent=1 // pred_region
      _
    $region33: #{tpu_custom_call.1} parent=1 // pred_fallthru
      _
    // Predicated region
    $region34: #{tpu_custom_call.1} parent=1 // pred_check
      _
    $region35: #{tpu_custom_call.1} parent=1 // pred_check_branch
      %32 = sbr.rel (0) target = $region37
    $region36: #{tpu_custom_call.1} parent=1 // pred_region
      _
    $region37: #{tpu_custom_call.1} parent=1 // pred_fallthru
      _
    %v33 = vld [vmem:[%s0] sm:$0xf]
    %v34 = vld [vmem:[%s1] sm:$0xff]
    %v35 = vld [vmem:[%s1 + $0x8] sm:$0xff]
    %v36 = vld [vmem:[%s1 + $0x10] sm:$0xff]
    %v37 = vld [vmem:[%s1 + $0x18] sm:$0xff]
    %v38 = vld [vmem:[%s2] sm:$0xff]
    %v39 = vld [vmem:[%s2 + $0x8] sm:$0xff]
    %v40 = vld [vmem:[%s2 + $0x10] sm:$0xff]
    %v41 = vld [vmem:[%s2 + $0x18] sm:$0xff]
    %43 = vset.pattern.permute.xlu0 0
    %44 = vperm.xlu0 %43, %v38
    %v45 = vpop.permute.xlu0 %44
    %48 = vset.pattern.permute.xlu0 0
    %49 = vperm.xlu0 %48, %v39
    %v50 = vpop.permute.xlu0 %49
    %53 = vset.pattern.permute.xlu0 0
    %54 = vperm.xlu0 %53, %v40
    %v55 = vpop.permute.xlu0 %54
    %58 = vset.pattern.permute.xlu0 0
    %59 = vperm.xlu0 %58, %v41
    %v60 = vpop.permute.xlu0 %59
    %vm62 = vcmask 31744
    %v64 = vsel %vm62, %v34, 0
    %v67 = vsel %vm62, %v35, 0
    %v70 = vsel %vm62, %v36, 0
    %v73 = vsel %vm62, %v37, 0
    %vm75 = vcmask 1043456
    %v77 = vsel %vm75, %v33, 0
    %79 = vmatprep.subr.mxu0 0.0
    %80 = vmatpush1.msra.mxu0 %v77
    %81 = vmatprep.subr.mxu0 0.0
    %82 = vmatpush1.msra.mxu0 0.0
    %83 = vmatprep.subr.mxu0 0.0
    %84 = vmatpush1.msra.mxu0 0.0
    %85 = vmatprep.subr.mxu0 0.0
    %86 = vmatpush1.msra.mxu0 0.0
    %87 = vmatprep.subr.mxu0 0.0
    %88 = vmatpush1.msra.mxu0 0.0
    %89 = vmatprep.subr.mxu0 0.0
    %90 = vmatpush1.msra.mxu0 0.0
    %91 = vmatprep.subr.mxu0 0.0
    %92 = vmatpush1.msra.mxu0 0.0
    %93 = vmatprep.subr.mxu0 0.0
    %94 = vmatpush1.msra.mxu0 0.0
    %95 = vmatprep.subr.mxu0 0.0
    %96 = vmatpush1.msra.mxu0 0.0
    %97 = vmatprep.subr.mxu0 0.0
    %98 = vmatpush1.msra.mxu0 0.0
    %99 = vmatprep.subr.mxu0 0.0
    %100 = vmatpush1.msra.mxu0 0.0
    %101 = vmatprep.subr.mxu0 0.0
    %102 = vmatpush1.msra.mxu0 0.0
    %103 = vmatprep.subr.mxu0 0.0
    %104 = vmatpush1.msra.mxu0 0.0
    %105 = vmatprep.subr.mxu0 0.0
    %106 = vmatpush1.msra.mxu0 0.0
    %107 = vmatprep.subr.mxu0 0.0
    %108 = vmatpush1.msra.mxu0 0.0
    %109 = vmatprep.subr.mxu0 0.0
    %110 = vmatpush1.msra.mxu0 0.0
    %111 = vmatprep.subr.mxu0 0.0
    %112 = vmatpush1.msra.mxu0 0.0
    %113 = vmatprep.subr.mxu0 0.0
    %114 = vmatpush1.msra.mxu0 0.0
    %115 = vmatprep.subr.mxu0 0.0
    %116 = vmatpush1.msra.mxu0 0.0
    %117 = vmatprep.subr.mxu0 0.0
    %118 = vmatpush1.msra.mxu0 0.0
    %119 = vmatprep.subr.mxu0 0.0
    %120 = vmatpush1.msra.mxu0 0.0
    %121 = vmatprep.subr.mxu0 0.0
    %122 = vmatpush1.msra.mxu0 0.0
    %123 = vmatprep.subr.mxu0 0.0
    %124 = vmatpush1.msra.mxu0 0.0
    %125 = vmatprep.subr.mxu0 0.0
    %126 = vmatpush1.msra.mxu0 0.0
    %127 = vmatprep.subr.mxu0 0.0
    %128 = vmatpush1.msra.mxu0 0.0
    %129 = vmatprep.subr.mxu0 0.0
    %130 = vmatpush1.msra.mxu0 0.0
    %131 = vmatprep.subr.mxu0 0.0
    %132 = vmatpush1.msra.mxu0 0.0
    %133 = vmatprep.subr.mxu0 0.0
    %134 = vmatpush1.msra.mxu0 0.0
    %135 = vmatprep.subr.mxu0 0.0
    %136 = vmatpush1.msra.mxu0 0.0
    %137 = vmatprep.subr.mxu0 0.0
    %138 = vmatpush1.msra.mxu0 0.0
    %139 = vmatprep.subr.mxu0 0.0
    %140 = vmatpush1.msra.mxu0 0.0
    %141 = vmatprep.subr.mxu0 0.0
    %142 = vmatpush1.msra.mxu0 0.0
    %143 = vmatprep.mubr.f32.mxu0 0.0
    %144 = vmatmul.mubr.f32.gmra.mrb[0].mxu0 %v64
    %v145 = vpop.f32.mrb[0].mxu0
    %v146 = vadd.f32 %v45, %v145
    %v147 = vpop.f32.mrb[0].mxu0
    %148 = vmatprep.mubr.f32.mxu0 0.0
    %149 = vmatmul.mubr.f32.gmra.mrb[0].mxu0 %v67
    %v150 = vpop.f32.mrb[0].mxu0
    %v151 = vadd.f32 %v50, %v150
    %v152 = vpop.f32.mrb[0].mxu0
    %153 = vmatprep.mubr.f32.mxu0 0.0
    %154 = vmatmul.mubr.f32.gmra.mrb[0].mxu0 %v70
    %v155 = vpop.f32.mrb[0].mxu0
    %v156 = vadd.f32 %v55, %v155
    %v157 = vpop.f32.mrb[0].mxu0
    %158 = vmatprep.mubr.f32.mxu0 0.0
    %159 = vmatmul.mubr.f32.gmra.mrb[0].mxu0 %v73
    %v160 = vpop.f32.mrb[0].mxu0
    %v161 = vadd.f32 %v60, %v160
    %v162 = vpop.f32.mrb[0].mxu0
    %163 = vdwg.mxu0
    %v164 = vmax.f32 %v146, 0.0
    %v165 = vmax.f32 %v151, 0.0
    %v166 = vmax.f32 %v156, 0.0
    %v167 = vmax.f32 %v161, 0.0
    %v168 = vld [vmem:[%s3] sm:$0xff]
    %v169 = vld [vmem:[%s3 + $0x8] sm:$0xff]
    %v170 = vld [vmem:[%s3 + $0x10] sm:$0xff]
    %v171 = vld [vmem:[%s3 + $0x18] sm:$0xff]
    %v172 = vld [vmem:[%s4] sm:$0xff]
    %v173 = vld [vmem:[%s4 + $0x8] sm:$0xff]
    %v174 = vld [vmem:[%s4 + $0x10] sm:$0xff]
    %v175 = vld [vmem:[%s4 + $0x18] sm:$0xff]
    %177 = vset.pattern.permute.xlu0 0
    %178 = vperm.xlu0 %177, %v172
    %v179 = vpop.permute.xlu0 %178
    %182 = vset.pattern.permute.xlu0 0
    %183 = vperm.xlu0 %182, %v173
    %v184 = vpop.permute.xlu0 %183
    %187 = vset.pattern.permute.xlu0 0
    %188 = vperm.xlu0 %187, %v174
    %v189 = vpop.permute.xlu0 %188
    %192 = vset.pattern.permute.xlu0 0
    %193 = vperm.xlu0 %192, %v175
    %v194 = vpop.permute.xlu0 %193
    %vm196 = vcmask 261120
    %v198 = vsel %vm196, %v168, 0
    %v201 = vsel %vm196, %v169, 0
    %v204 = vsel %vm196, %v170, 0
    %v207 = vsel %vm196, %v171, 0
    %209 = vmatprep.subr.mxu0 0.0
    %210 = vmatpush1.msra.mxu0 %v164
    %211 = vmatprep.subr.mxu0 0.0
    %212 = vmatpush1.msra.mxu0 %v165
    %213 = vmatprep.subr.mxu0 0.0
    %214 = vmatpush1.msra.mxu0 %v166
    %215 = vmatprep.subr.mxu0 0.0
    %216 = vmatpush1.msra.mxu0 %v167
    %217 = vmatprep.subr.mxu0 0.0
    %218 = vmatpush1.msra.mxu0 0.0
    %219 = vmatprep.subr.mxu0 0.0
    %220 = vmatpush1.msra.mxu0 0.0
    %221 = vmatprep.subr.mxu0 0.0
    %222 = vmatpush1.msra.mxu0 0.0
    %223 = vmatprep.subr.mxu0 0.0
    %224 = vmatpush1.msra.mxu0 0.0
    %225 = vmatprep.subr.mxu0 0.0
    %226 = vmatpush1.msra.mxu0 0.0
    %227 = vmatprep.subr.mxu0 0.0
    %228 = vmatpush1.msra.mxu0 0.0
    %229 = vmatprep.subr.mxu0 0.0
    %230 = vmatpush1.msra.mxu0 0.0
    %231 = vmatprep.subr.mxu0 0.0
    %232 = vmatpush1.msra.mxu0 0.0
    %233 = vmatprep.subr.mxu0 0.0
    %234 = vmatpush1.msra.mxu0 0.0
    %235 = vmatprep.subr.mxu0 0.0
    %236 = vmatpush1.msra.mxu0 0.0
    %237 = vmatprep.subr.mxu0 0.0
    %238 = vmatpush1.msra.mxu0 0.0
    %239 = vmatprep.subr.mxu0 0.0
    %240 = vmatpush1.msra.mxu0 0.0
    %241 = vmatprep.subr.mxu0 0.0
    %242 = vmatpush1.msra.mxu0 0.0
    %243 = vmatprep.subr.mxu0 0.0
    %244 = vmatpush1.msra.mxu0 0.0
    %245 = vmatprep.subr.mxu0 0.0
    %246 = vmatpush1.msra.mxu0 0.0
    %247 = vmatprep.subr.mxu0 0.0
    %248 = vmatpush1.msra.mxu0 0.0
    %249 = vmatprep.subr.mxu0 0.0
    %250 = vmatpush1.msra.mxu0 0.0
    %251 = vmatprep.subr.mxu0 0.0
    %252 = vmatpush1.msra.mxu0 0.0
    %253 = vmatprep.subr.mxu0 0.0
    %254 = vmatpush1.msra.mxu0 0.0
    %255 = vmatprep.subr.mxu0 0.0
    %256 = vmatpush1.msra.mxu0 0.0
    %257 = vmatprep.subr.mxu0 0.0
    %258 = vmatpush1.msra.mxu0 0.0
    %259 = vmatprep.subr.mxu0 0.0
    %260 = vmatpush1.msra.mxu0 0.0
    %261 = vmatprep.subr.mxu0 0.0
    %262 = vmatpush1.msra.mxu0 0.0
    %263 = vmatprep.subr.mxu0 0.0
    %264 = vmatpush1.msra.mxu0 0.0
    %265 = vmatprep.subr.mxu0 0.0
    %266 = vmatpush1.msra.mxu0 0.0
    %267 = vmatprep.subr.mxu0 0.0
    %268 = vmatpush1.msra.mxu0 0.0
    %269 = vmatprep.subr.mxu0 0.0
    %270 = vmatpush1.msra.mxu0 0.0
    %271 = vmatprep.subr.mxu0 0.0
    %272 = vmatpush1.msra.mxu0 0.0
    %273 = vmatprep.mubr.f32.mxu0 0.0
    %274 = vmatmul.mubr.f32.gmra.mrb[0].mxu0 %v198
    %v275 = vpop.f32.mrb[0].mxu0
    %v276 = vadd.f32 %v179, %v275
    %v277 = vpop.f32.mrb[0].mxu0
    %278 = vmatprep.mubr.f32.mxu0 0.0
    %279 = vmatmul.mubr.f32.gmra.mrb[0].mxu0 %v201
    %v280 = vpop.f32.mrb[0].mxu0
    %v281 = vadd.f32 %v184, %v280
    %v282 = vpop.f32.mrb[0].mxu0
    %283 = vmatprep.mubr.f32.mxu0 0.0
    %284 = vmatmul.mubr.f32.gmra.mrb[0].mxu0 %v204
    %v285 = vpop.f32.mrb[0].mxu0
    %v286 = vadd.f32 %v189, %v285
    %v287 = vpop.f32.mrb[0].mxu0
    %288 = vmatprep.mubr.f32.mxu0 0.0
    %289 = vmatmul.mubr.f32.gmra.mrb[0].mxu0 %v207
    %v290 = vpop.f32.mrb[0].mxu0
    %v291 = vadd.f32 %v194, %v290
    %v292 = vpop.f32.mrb[0].mxu0
    %293 = vdwg.mxu0
    %v294 = vmax.f32 %v276, 0.0
    %v295 = vmax.f32 %v281, 0.0
    %v296 = vmax.f32 %v286, 0.0
    %v297 = vmax.f32 %v291, 0.0
    %v298 = vld [vmem:[%s5] sm:$0xff]
    %v299 = vld [vmem:[%s5 + $0x8] sm:$0xff]
    %v300 = vld [vmem:[%s5 + $0x10] sm:$0xff]
    %v301 = vld [vmem:[%s5 + $0x18] sm:$0xff]
    %v302 = vld [vmem:[%s6] sm:$0xff]
    %v303 = vld [vmem:[%s6 + $0x8] sm:$0xff]
    %v304 = vld [vmem:[%s6 + $0x10] sm:$0xff]
    %v305 = vld [vmem:[%s6 + $0x18] sm:$0xff]
    %307 = vset.pattern.permute.xlu0 0
    %308 = vperm.xlu0 %307, %v302
    %v309 = vpop.permute.xlu0 %308
    %312 = vset.pattern.permute.xlu0 0
    %313 = vperm.xlu0 %312, %v303
    %v314 = vpop.permute.xlu0 %313
    %317 = vset.pattern.permute.xlu0 0
    %318 = vperm.xlu0 %317, %v304
    %v319 = vpop.permute.xlu0 %318
    %322 = vset.pattern.permute.xlu0 0
    %323 = vperm.xlu0 %322, %v305
    %v324 = vpop.permute.xlu0 %323
    %v327 = vsel %vm196, %v298, 0
    %v330 = vsel %vm196, %v299, 0
    %v333 = vsel %vm196, %v300, 0
    %v336 = vsel %vm196, %v301, 0
    %338 = vmatprep.subr.mxu0 0.0
    %339 = vmatpush1.msra.mxu0 %v294
    %340 = vmatprep.subr.mxu0 0.0
    %341 = vmatpush1.msra.mxu0 %v295
    %342 = vmatprep.subr.mxu0 0.0
    %343 = vmatpush1.msra.mxu0 %v296
    %344 = vmatprep.subr.mxu0 0.0
    %345 = vmatpush1.msra.mxu0 %v297
    %346 = vmatprep.subr.mxu0 0.0
    %347 = vmatpush1.msra.mxu0 0.0
    %348 = vmatprep.subr.mxu0 0.0
    %349 = vmatpush1.msra.mxu0 0.0
    %350 = vmatprep.subr.mxu0 0.0
    %351 = vmatpush1.msra.mxu0 0.0
    %352 = vmatprep.subr.mxu0 0.0
    %353 = vmatpush1.msra.mxu0 0.0
    %354 = vmatprep.subr.mxu0 0.0
    %355 = vmatpush1.msra.mxu0 0.0
    %356 = vmatprep.subr.mxu0 0.0
    %357 = vmatpush1.msra.mxu0 0.0
    %358 = vmatprep.subr.mxu0 0.0
    %359 = vmatpush1.msra.mxu0 0.0
    %360 = vmatprep.subr.mxu0 0.0
    %361 = vmatpush1.msra.mxu0 0.0
    %362 = vmatprep.subr.mxu0 0.0
    %363 = vmatpush1.msra.mxu0 0.0
    %364 = vmatprep.subr.mxu0 0.0
    %365 = vmatpush1.msra.mxu0 0.0
    %366 = vmatprep.subr.mxu0 0.0
    %367 = vmatpush1.msra.mxu0 0.0
    %368 = vmatprep.subr.mxu0 0.0
    %369 = vmatpush1.msra.mxu0 0.0
    %370 = vmatprep.subr.mxu0 0.0
    %371 = vmatpush1.msra.mxu0 0.0
    %372 = vmatprep.subr.mxu0 0.0
    %373 = vmatpush1.msra.mxu0 0.0
    %374 = vmatprep.subr.mxu0 0.0
    %375 = vmatpush1.msra.mxu0 0.0
    %376 = vmatprep.subr.mxu0 0.0
    %377 = vmatpush1.msra.mxu0 0.0
    %378 = vmatprep.subr.mxu0 0.0
    %379 = vmatpush1.msra.mxu0 0.0
    %380 = vmatprep.subr.mxu0 0.0
    %381 = vmatpush1.msra.mxu0 0.0
    %382 = vmatprep.subr.mxu0 0.0
    %383 = vmatpush1.msra.mxu0 0.0
    %384 = vmatprep.subr.mxu0 0.0
    %385 = vmatpush1.msra.mxu0 0.0
    %386 = vmatprep.subr.mxu0 0.0
    %387 = vmatpush1.msra.mxu0 0.0
    %388 = vmatprep.subr.mxu0 0.0
    %389 = vmatpush1.msra.mxu0 0.0
    %390 = vmatprep.subr.mxu0 0.0
    %391 = vmatpush1.msra.mxu0 0.0
    %392 = vmatprep.subr.mxu0 0.0
    %393 = vmatpush1.msra.mxu0 0.0
    %394 = vmatprep.subr.mxu0 0.0
    %395 = vmatpush1.msra.mxu0 0.0
    %396 = vmatprep.subr.mxu0 0.0
    %397 = vmatpush1.msra.mxu0 0.0
    %398 = vmatprep.subr.mxu0 0.0
    %399 = vmatpush1.msra.mxu0 0.0
    %400 = vmatprep.subr.mxu0 0.0
    %401 = vmatpush1.msra.mxu0 0.0
    %402 = vmatprep.mubr.f32.mxu0 0.0
    %403 = vmatmul.mubr.f32.gmra.mrb[0].mxu0 %v327
    %v404 = vpop.f32.mrb[0].mxu0
    %v405 = vadd.f32 %v309, %v404
    %v406 = vpop.f32.mrb[0].mxu0
    %407 = vmatprep.mubr.f32.mxu0 0.0
    %408 = vmatmul.mubr.f32.gmra.mrb[0].mxu0 %v330
    %v409 = vpop.f32.mrb[0].mxu0
    %v410 = vadd.f32 %v314, %v409
    %v411 = vpop.f32.mrb[0].mxu0
    %412 = vmatprep.mubr.f32.mxu0 0.0
    %413 = vmatmul.mubr.f32.gmra.mrb[0].mxu0 %v333
    %v414 = vpop.f32.mrb[0].mxu0
    %v415 = vadd.f32 %v319, %v414
    %v416 = vpop.f32.mrb[0].mxu0
    %417 = vmatprep.mubr.f32.mxu0 0.0
    %418 = vmatmul.mubr.f32.gmra.mrb[0].mxu0 %v336
    %v419 = vpop.f32.mrb[0].mxu0
    %v420 = vadd.f32 %v324, %v419
    %v421 = vpop.f32.mrb[0].mxu0
    %422 = vdwg.mxu0
    %v423 = vmax.f32 %v405, 0.0
    %v424 = vmax.f32 %v410, 0.0
    %v425 = vmax.f32 %v415, 0.0
    %v426 = vmax.f32 %v420, 0.0
    %v427 = vld [vmem:[%s7] sm:$0x3]
    %v428 = vld [vmem:[%s8] sm:$0x3]
    %430 = vset.pattern.permute.xlu0 0
    %431 = vperm.xlu0 %430, %v428
    %v432 = vpop.permute.xlu0 %431
    %v435 = vsel %vm196, %v427, 0
    %437 = vmatprep.subr.mxu0 0.0
    %438 = vmatpush1.msra.mxu0 %v423
    %439 = vmatprep.subr.mxu0 0.0
    %440 = vmatpush1.msra.mxu0 %v424
    %441 = vmatprep.subr.mxu0 0.0
    %442 = vmatpush1.msra.mxu0 %v425
    %443 = vmatprep.subr.mxu0 0.0
    %444 = vmatpush1.msra.mxu0 %v426
    %445 = vmatprep.subr.mxu0 0.0
    %446 = vmatpush1.msra.mxu0 0.0
    %447 = vmatprep.subr.mxu0 0.0
    %448 = vmatpush1.msra.mxu0 0.0
    %449 = vmatprep.subr.mxu0 0.0
    %450 = vmatpush1.msra.mxu0 0.0
    %451 = vmatprep.subr.mxu0 0.0
    %452 = vmatpush1.msra.mxu0 0.0
    %453 = vmatprep.subr.mxu0 0.0
    %454 = vmatpush1.msra.mxu0 0.0
    %455 = vmatprep.subr.mxu0 0.0
    %456 = vmatpush1.msra.mxu0 0.0
    %457 = vmatprep.subr.mxu0 0.0
    %458 = vmatpush1.msra.mxu0 0.0
    %459 = vmatprep.subr.mxu0 0.0
    %460 = vmatpush1.msra.mxu0 0.0
    %461 = vmatprep.subr.mxu0 0.0
    %462 = vmatpush1.msra.mxu0 0.0
    %463 = vmatprep.subr.mxu0 0.0
    %464 = vmatpush1.msra.mxu0 0.0
    %465 = vmatprep.subr.mxu0 0.0
    %466 = vmatpush1.msra.mxu0 0.0
    %467 = vmatprep.subr.mxu0 0.0
    %468 = vmatpush1.msra.mxu0 0.0
    %469 = vmatprep.subr.mxu0 0.0
    %470 = vmatpush1.msra.mxu0 0.0
    %471 = vmatprep.subr.mxu0 0.0
    %472 = vmatpush1.msra.mxu0 0.0
    %473 = vmatprep.subr.mxu0 0.0
    %474 = vmatpush1.msra.mxu0 0.0
    %475 = vmatprep.subr.mxu0 0.0
    %476 = vmatpush1.msra.mxu0 0.0
    %477 = vmatprep.subr.mxu0 0.0
    %478 = vmatpush1.msra.mxu0 0.0
    %479 = vmatprep.subr.mxu0 0.0
    %480 = vmatpush1.msra.mxu0 0.0
    %481 = vmatprep.subr.mxu0 0.0
    %482 = vmatpush1.msra.mxu0 0.0
    %483 = vmatprep.subr.mxu0 0.0
    %484 = vmatpush1.msra.mxu0 0.0
    %485 = vmatprep.subr.mxu0 0.0
    %486 = vmatpush1.msra.mxu0 0.0
    %487 = vmatprep.subr.mxu0 0.0
    %488 = vmatpush1.msra.mxu0 0.0
    %489 = vmatprep.subr.mxu0 0.0
    %490 = vmatpush1.msra.mxu0 0.0
    %491 = vmatprep.subr.mxu0 0.0
    %492 = vmatpush1.msra.mxu0 0.0
    %493 = vmatprep.subr.mxu0 0.0
    %494 = vmatpush1.msra.mxu0 0.0
    %495 = vmatprep.subr.mxu0 0.0
    %496 = vmatpush1.msra.mxu0 0.0
    %497 = vmatprep.subr.mxu0 0.0
    %498 = vmatpush1.msra.mxu0 0.0
    %499 = vmatprep.subr.mxu0 0.0
    %500 = vmatpush1.msra.mxu0 0.0
    %501 = vmatprep.mubr.f32.mxu0 0.0
    %502 = vmatmul.mubr.f32.gmra.mrb[0].mxu0 %v435
    %v503 = vpop.f32.mrb[0].mxu0
    %v504 = vadd.f32 %v432, %v503
    %v505 = vpop.f32.mrb[0].mxu0
    %506 = vdwg.mxu0
    %507 = vst [vmem:[#allocation2] sm:$0x3] %v504
    // Predicated region
    $region38: #{tpu_custom_call.1} parent=1 // pred_check
      _
    $region39: #{tpu_custom_call.1} parent=1 // pred_check_branch
      %509 = sbr.rel (0) target = $region41
    $region40: #{tpu_custom_call.1} parent=1 // pred_region
      %s511 = ssub.s32 32, 32
      %512 = vsyncadd [#allocation3], %s511
      %s514 = sshll.u32 [#allocation2], 4
      %s515 = int_to_ptr.vmem [resolvable:$true] %s514
      %517 = dma.vmem_to_hbm [thread:$0]  %s515, 32, %s9, [#allocation3]
    $region41: #{tpu_custom_call.1} parent=1 // pred_fallthru
      _
    // Predicated region
    $region42: #{tpu_custom_call.1} parent=1 // pred_check
      _
    $region43: #{tpu_custom_call.1} parent=1 // pred_check_branch
      %519 = sbr.rel (0) target = $region45
    $region44: #{tpu_custom_call.1} parent=1 // pred_region
      %520 = dma.done [#allocation3], 32
    $region45: #{tpu_custom_call.1} parent=1 // pred_fallthru
      _
    %521 = vsyncpa [#allocation3], 1

</llo_original>
